<compile_context>
chip_gen: v5e
topology: v5e:2x2
jax: 0.10.0
libtpu: 0.0.40
codegen_flags: <defaults>
</compile_context>

<pallas_src>
import functools

import jax
import jax.numpy as jnp
from jax.experimental import pallas as pl
from jax.experimental.pallas import tpu as pltpu

LANES = 128
SUBLANES = 8
NUM_SHARDS = 2                        # leading "parallel" axis -> 2 TCs on v7x
CHUNK_ROWS = 1024                     # in-kernel compute chunk (~0.5 MiB f32)
BLOCK_BYTE_BUDGET = 4 * 1024 * 1024   # per input per pipeline block
VMEM_LIMIT_BYTES = 48 * 1024 * 1024   # > 2 inputs x 2 buffers x 4 MiB + scratch


def _round_down(x, m):
    return (x // m) * m


def _dice_partial_kernel(x_ref, t_ref, inter_ref, union_ref, *,
                         tile_rows, chunk_rows, rows_total, steps_per_shard,
                         need_mask):
    """Accumulates per-lane intersection / union partials into the shard's
    resident (8,128) output blocks."""
    c = pl.program_id(0)   # shard (TensorCore) index
    k = pl.program_id(1)   # reduction step within the shard

    @pl.when(k == 0)
    def _():
        inter_ref[...] = jnp.zeros_like(inter_ref)
        union_ref[...] = jnp.zeros_like(union_ref)

    # Nominal (unclamped) first row covered by this grid step.
    block_row0 = (c * steps_per_shard + k) * tile_rows
    sub = chunk_rows // SUBLANES

    for j in range(tile_rows // chunk_rows):   # static unroll over chunks
        r0 = j * chunk_rows
        x = x_ref[r0:r0 + chunk_rows, :].astype(jnp.float32)
        t = t_ref[r0:r0 + chunk_rows, :].astype(jnp.float32)

        # sigmoid(x) == 0.5 * (tanh(x/2) + 1): one EUP transcendental/element.
        pred = 0.5 * (jnp.tanh(0.5 * x) + 1.0)

        if need_mask:
            # Rows past the end of the array (ragged last block, or a clamped
            # duplicate block on the over-provisioned shard) are zeroed.
            # Mask applied AFTER tanh with a select so garbage VMEM never
            # propagates NaN.
            valid = rows_total - block_row0 - r0
            row_ids = jax.lax.broadcasted_iota(jnp.int32, (chunk_rows, LANES), 0)
            keep = row_ids < valid
            pred = jnp.where(keep, pred, 0.0)
            t = jnp.where(keep, t, 0.0)

        # Pure VPU adds onto the shard's resident (8,128) accumulators.
        inter_ref[...] += jnp.sum((pred * t).reshape(sub, SUBLANES, LANES), axis=0)
        union_ref[...] += jnp.sum((pred + t).reshape(sub, SUBLANES, LANES), axis=0)


def dice_loss(output, target, smooth=1e-07):
    assert output.shape == target.shape, "Prediction and target shape mismatch"

    out_flat = output.reshape(-1)
    tgt_flat = target.reshape(-1)
    n = out_flat.shape[0]
    rows_full = n // LANES            # number of complete 128-lane rows

    if rows_full >= SUBLANES:
        main_elems = rows_full * LANES

        # ---- block / grid sizing -------------------------------------------
        itemsize = max(jnp.dtype(output.dtype).itemsize,
                       jnp.dtype(target.dtype).itemsize)
        cap_rows = max(SUBLANES,
                       _round_down(BLOCK_BYTE_BUDGET // (LANES * itemsize),
                                   SUBLANES))
        tile_rows = min(cap_rows, _round_down(rows_full, SUBLANES))
        # Keep >= ~4 pipeline steps per shard on medium inputs for DMA/compute
        # overlap.
        overlap_rows = _round_down(rows_full // (4 * NUM_SHARDS), SUBLANES)
        if overlap_rows >= SUBLANES:
            tile_rows = min(tile_rows, overlap_rows)
        # Keep tile an exact multiple of the in-kernel compute chunk.
        if tile_rows >= CHUNK_ROWS:
            tile_rows = _round_down(tile_rows, CHUNK_ROWS)
        chunk_rows = min(tile_rows, CHUNK_ROWS)

        total_blocks = pl.cdiv(rows_full, tile_rows)
        steps_per_shard = pl.cdiv(total_blocks, NUM_SHARDS)
        last_block = total_blocks - 1
        need_mask = (rows_full % tile_rows != 0) or (total_blocks % NUM_SHARDS != 0)

        # ---- inputs ----------------------------------------------------------
        if main_elems == n:
            # Contiguous reshape: free in XLA, no extra HBM traffic.
            x_main = out_flat.reshape(rows_full, LANES)
            t_main = tgt_flat.reshape(rows_full, LANES)
        else:
            # TODO(synk): for n % 128 != 0 this prefix slice is materialized by
            # XLA (extra HBM round trip); a 1-D in-kernel ragged path would
            # remove it.
            x_main = out_flat[:main_elems].reshape(rows_full, LANES)
            t_main = tgt_flat[:main_elems].reshape(rows_full, LANES)

        def _in_index_map(c, k):
            # Clamp so the over-provisioned shard never issues an OOB DMA; the
            # kernel's row mask zeroes the duplicated block's contribution.
            return (jnp.minimum(c * steps_per_shard + k, last_block), 0)

        kernel = functools.partial(
            _dice_partial_kernel,
            tile_rows=tile_rows, chunk_rows=chunk_rows, rows_total=rows_full,
            steps_per_shard=steps_per_shard, need_mask=need_mask)

        inter_acc, union_acc = pl.pallas_call(
            kernel,
            out_shape=(
                jax.ShapeDtypeStruct((NUM_SHARDS * SUBLANES, LANES), jnp.float32),
                jax.ShapeDtypeStruct((NUM_SHARDS * SUBLANES, LANES), jnp.float32),
            ),
            grid_spec=pltpu.PrefetchScalarGridSpec(
                num_scalar_prefetch=0,
                grid=(NUM_SHARDS, steps_per_shard),
                in_specs=[
                    pl.BlockSpec((tile_rows, LANES), _in_index_map),
                    pl.BlockSpec((tile_rows, LANES), _in_index_map),
                ],
                out_specs=[
                    pl.BlockSpec((SUBLANES, LANES), lambda c, k: (c, 0)),
                    pl.BlockSpec((SUBLANES, LANES), lambda c, k: (c, 0)),
                ],
            ),
            compiler_params=pltpu.CompilerParams(
                dimension_semantics=("parallel", "arbitrary"),
                vmem_limit_bytes=VMEM_LIMIT_BYTES),
        )(x_main, t_main)

        intersection = jnp.sum(inter_acc)
        union = jnp.sum(union_acc)
    else:
        main_elems = 0
        intersection = jnp.float32(0.0)
        union = jnp.float32(0.0)

    # Tail (< 128 elements, or everything for tiny inputs): plain JAX.
    if main_elems < n:
        tail_pred = jax.nn.sigmoid(out_flat[main_elems:].astype(jnp.float32))
        tail_t = tgt_flat[main_elems:].astype(jnp.float32)
        intersection = intersection + jnp.sum(tail_pred * tail_t)
        union = union + jnp.sum(tail_pred) + jnp.sum(tail_t)

    return 1.0 - (2.0 * intersection + smooth) / (union + smooth)


def dice_loss_ref(output, target, smooth=1e-07):
    pred = jax.nn.sigmoid(output.astype(jnp.float32)).reshape(-1)
    tgt = target.astype(jnp.float32).reshape(-1)
    intersection = jnp.sum(pred * tgt)
    union = jnp.sum(pred) + jnp.sum(tgt)
    return 1.0 - (2.0 * intersection + smooth) / (union + smooth)


if __name__ == "__main__":
    key = jax.random.PRNGKey(0)
    k1, k2, k3, k4 = jax.random.split(key, 4)

    # Typical segmentation use: logits + binary mask, NCHW.
    x = jax.random.normal(k1, (2, 4, 16, 16), dtype=jnp.float32)   # pre-sigmoid logits
    mask = (jax.random.uniform(k2, (2, 4, 16, 16)) > 0.5).astype(jnp.float32)

    loss = dice_loss(x, mask)
    jax.block_until_ready(loss)
    ref = dice_loss_ref(x, mask)
    assert jnp.allclose(loss, ref, atol=1e-5, rtol=1e-5), (loss, ref)

    # Second (still small) shape that exercises multi-step accumulation and the
    # two-shard split: 64 rows -> grid (2, 4).
    x2 = jax.random.normal(k3, (2, 4, 32, 32), dtype=jnp.float32)
    mask2 = (jax.random.uniform(k4, (2, 4, 32, 32)) > 0.5).astype(jnp.float32)
    loss2 = dice_loss(x2, mask2)
    jax.block_until_ready(loss2)
    ref2 = dice_loss_ref(x2, mask2)
    assert jnp.allclose(loss2, ref2, atol=1e-5, rtol=1e-5), (loss2, ref2)

    print("KERNEL_OK")
</pallas_src>

<mosaic_0001>
module attributes {stable_mosaic.version = 11 : i64} {
  func.func @_dice_partial_kernel(%arg0: i32, %arg1: i32, %arg2: memref<16x128xf32, #tpu.memory_space<vmem>>, %arg3: memref<16x128xf32, #tpu.memory_space<vmem>>, %arg4: memref<8x128xf32, #tpu.memory_space<vmem>>, %arg5: memref<8x128xf32, #tpu.memory_space<vmem>>) attributes {dimension_semantics = [#tpu.dimension_semantics<parallel>, #tpu.dimension_semantics<arbitrary>], iteration_bounds = array<i64: 2, 1>, scalar_prefetch = 0 : i64, scratch_operands = 0 : i64, tpu.core_type = #tpu.core_type<tc>, window_params = [{transform_indices = @transform_0, window_bounds = array<i64: 16, 128>}, {transform_indices = @transform_1, window_bounds = array<i64: 16, 128>}, {transform_indices = @transform_2, window_bounds = array<i64: 8, 128>}, {transform_indices = @transform_3, window_bounds = array<i64: 8, 128>}]} {
    %c0_i32 = arith.constant 0 : i32
    %0 = arith.cmpi eq, %arg1, %c0_i32 : i32
    %1 = arith.extui %0 : i1 to i32
    %c0_i32_0 = arith.constant 0 : i32
    %2 = arith.cmpi ne, %1, %c0_i32_0 : i32
    scf.if %2 {
      %cst_20 = arith.constant 0.000000e+00 : f32
      %36 = vector.broadcast %cst_20 : f32 to vector<8x128xf32>
      %c0_21 = arith.constant 0 : index
      %c0_22 = arith.constant 0 : index
      %37 = vector.load %arg4[%c0_21, %c0_22] : memref<8x128xf32, #tpu.memory_space<vmem>>, vector<8x128xf32>
      tpu.vector_store %arg4[%c0_21, %c0_22], %36 {strides = array<i32>} : memref<8x128xf32, #tpu.memory_space<vmem>>, vector<8x128xf32>,
      %cst_23 = arith.constant 0.000000e+00 : f32
      %38 = vector.broadcast %cst_23 : f32 to vector<8x128xf32>
      %c0_24 = arith.constant 0 : index
      %c0_25 = arith.constant 0 : index
      %39 = vector.load %arg5[%c0_24, %c0_25] : memref<8x128xf32, #tpu.memory_space<vmem>>, vector<8x128xf32>
      tpu.vector_store %arg5[%c0_24, %c0_25], %38 {strides = array<i32>} : memref<8x128xf32, #tpu.memory_space<vmem>>, vector<8x128xf32>,
    } else {
    }
    %c1_i32 = arith.constant 1 : i32
    %3 = arith.muli %arg0, %c1_i32 : i32
    %4 = arith.addi %3, %arg1 : i32
    %c16_i32 = arith.constant 16 : i32
    %5 = arith.muli %4, %c16_i32 : i32
    %c0 = arith.constant 0 : index
    %c0_1 = arith.constant 0 : index
    %6 = vector.load %arg2[%c0, %c0_1] : memref<16x128xf32, #tpu.memory_space<vmem>>, vector<16x128xf32>
    %c0_2 = arith.constant 0 : index
    %c0_3 = arith.constant 0 : index
    %7 = vector.load %arg3[%c0_2, %c0_3] : memref<16x128xf32, #tpu.memory_space<vmem>>, vector<16x128xf32>
    %cst = arith.constant 5.000000e-01 : f32
    %8 = vector.broadcast %cst : f32 to vector<16x128xf32>
    %9 = arith.mulf %8, %6 : vector<16x128xf32>
    %10 = math.tanh %9 : vector<16x128xf32>
    %cst_4 = arith.constant 1.000000e+00 : f32
    %11 = vector.broadcast %cst_4 : f32 to vector<16x128xf32>
    %12 = arith.addf %10, %11 : vector<16x128xf32>
    %cst_5 = arith.constant 5.000000e-01 : f32
    %13 = vector.broadcast %cst_5 : f32 to vector<16x128xf32>
    %14 = arith.mulf %13, %12 : vector<16x128xf32>
    %c16_i32_6 = arith.constant 16 : i32
    %15 = arith.subi %c16_i32_6, %5 : i32
    %c0_i32_7 = arith.constant 0 : i32
    %16 = arith.subi %15, %c0_i32_7 : i32
    %17 = tpu.iota {dimensions = array<i32: 0>} : vector<16x128xi32>
    %18 = vector.broadcast %16 : i32 to vector<16x128xi32>
    %19 = arith.cmpi slt, %17, %18 : vector<16x128xi32>
    %cst_8 = arith.constant 0.000000e+00 : f32
    %20 = vector.broadcast %cst_8 : f32 to vector<16x128xf32>
    %21 = arith.select %19, %14, %20 : vector<16x128xi1>, vector<16x128xf32>
    %cst_9 = arith.constant 0.000000e+00 : f32
    %22 = vector.broadcast %cst_9 : f32 to vector<16x128xf32>
    %23 = arith.select %19, %7, %22 : vector<16x128xi1>, vector<16x128xf32>
    %c0_10 = arith.constant 0 : index
    %c0_11 = arith.constant 0 : index
    %24 = vector.load %arg4[%c0_10, %c0_11] : memref<8x128xf32, #tpu.memory_space<vmem>>, vector<8x128xf32>
    %25 = arith.mulf %21, %23 : vector<16x128xf32>
    %26 = vector.shape_cast %25 : vector<16x128xf32> to vector<2x8x128xf32>
    %cst_12 = arith.constant dense<0.000000e+00> : vector<8x128xf32>
    %27 = vector.multi_reduction <add>, %26, %cst_12 [0] : vector<2x8x128xf32> to vector<8x128xf32>
    %28 = arith.addf %24, %27 : vector<8x128xf32>
    %c0_13 = arith.constant 0 : index
    %c0_14 = arith.constant 0 : index
    %29 = vector.load %arg4[%c0_13, %c0_14] : memref<8x128xf32, #tpu.memory_space<vmem>>, vector<8x128xf32>
    tpu.vector_store %arg4[%c0_13, %c0_14], %28 {strides = array<i32>} : memref<8x128xf32, #tpu.memory_space<vmem>>, vector<8x128xf32>,
    %c0_15 = arith.constant 0 : index
    %c0_16 = arith.constant 0 : index
    %30 = vector.load %arg5[%c0_15, %c0_16] : memref<8x128xf32, #tpu.memory_space<vmem>>, vector<8x128xf32>
    %31 = arith.addf %21, %23 : vector<16x128xf32>
    %32 = vector.shape_cast %31 : vector<16x128xf32> to vector<2x8x128xf32>
    %cst_17 = arith.constant dense<0.000000e+00> : vector<8x128xf32>
    %33 = vector.multi_reduction <add>, %32, %cst_17 [0] : vector<2x8x128xf32> to vector<8x128xf32>
    %34 = arith.addf %30, %33 : vector<8x128xf32>
    %c0_18 = arith.constant 0 : index
    %c0_19 = arith.constant 0 : index
    %35 = vector.load %arg5[%c0_18, %c0_19] : memref<8x128xf32, #tpu.memory_space<vmem>>, vector<8x128xf32>
    tpu.vector_store %arg5[%c0_18, %c0_19], %34 {strides = array<i32>} : memref<8x128xf32, #tpu.memory_space<vmem>>, vector<8x128xf32>,
    return
  }
  func.func @transform_0(%arg0: i32, %arg1: i32) -> (i32, i32) {
    %c1_i32 = arith.constant 1 : i32
    %0 = arith.muli %arg0, %c1_i32 : i32
    %1 = arith.addi %0, %arg1 : i32
    %c0_i32 = arith.constant 0 : i32
    %2 = arith.minsi %1, %c0_i32 : i32
    %c0_i32_0 = arith.constant 0 : i32
    %c0_i32_1 = arith.constant 0 : i32
    return %2, %c0_i32_0 : i32, i32
  }
  func.func @transform_1(%arg0: i32, %arg1: i32) -> (i32, i32) {
    %c1_i32 = arith.constant 1 : i32
    %0 = arith.muli %arg0, %c1_i32 : i32
    %1 = arith.addi %0, %arg1 : i32
    %c0_i32 = arith.constant 0 : i32
    %2 = arith.minsi %1, %c0_i32 : i32
    %c0_i32_0 = arith.constant 0 : i32
    %c0_i32_1 = arith.constant 0 : i32
    return %2, %c0_i32_0 : i32, i32
  }
  func.func @transform_2(%arg0: i32, %arg1: i32) -> (i32, i32) {
    %c0_i32 = arith.constant 0 : i32
    %c0_i32_0 = arith.constant 0 : i32
    return %arg0, %c0_i32 : i32, i32
  }
  func.func @transform_3(%arg0: i32, %arg1: i32) -> (i32, i32) {
    %c0_i32 = arith.constant 0 : i32
    %c0_i32_0 = arith.constant 0 : i32
    return %arg0, %c0_i32 : i32, i32
  }
}

</mosaic_0001>

<llo_original>
// kernel: tpu_custom_call.1
$region0: #{tpu_custom_call.1}
  #allocation0 [shape = 'u32[]', space=smem, size = 0x4, offset = 0x4, fixed_abs, tag = 'smem constant byte address 0x4 - core index']
  #allocation1 [shape = 'u32[72,128]{1,0:T(1,128)}', space=vmem, size = 0x9000, scoped, tag = 'internal scratch']
  %s0 = inlined_call_operand.hbm [shape: f32[16,128], index: 0, kind: input, shape index: {}]
  %s1 = inlined_call_operand.hbm [shape: f32[16,128], index: 1, kind: input, shape index: {}]
  %s2 = inlined_call_operand.hbm [shape: f32[16,128], index: 2, kind: output, shape index: {0}]
  %s3 = inlined_call_operand.hbm [shape: f32[16,128], index: 3, kind: output, shape index: {1}]
  %4 = xla_tuple %s2, %s3
  %s5 = sld [smem:[#allocation0]]
  $region61: #{tpu_custom_call.1} parent=0
    _
  %s7 = ssub.s32 1, %s5
  %s8 = scalar_select 0, %s7, %s5
  $region1: #{tpu_custom_call.1} parent=0
    #allocation2 [shape = 'u8[16384]{0}', space=vmem, size = 0x4000, scoped, tag = 'input window, operand 0']
    #allocation3 [shape = 's32[2]{0}', space=sflag, size = 0x8, scoped, tag = 'scoped memory for tpu_custom_call.1']
    #allocation4 [shape = 's32[2]{0}', space=sflag, size = 0x8, scoped, tag = 'scoped memory for tpu_custom_call.1']
    #allocation5 [shape = 'u8[16384]{0}', space=vmem, size = 0x4000, scoped, tag = 'input window, operand 1']
    #allocation6 [shape = 's32[2]{0}', space=sflag, size = 0x8, scoped, tag = 'scoped memory for tpu_custom_call.1']
    #allocation7 [shape = 'u8[8192]{0}', space=vmem, size = 0x2000, scoped, tag = 'output window, operand 0']
    #allocation8 [shape = 'u8[8192]{0}', space=vmem, size = 0x2000, scoped, tag = 'output window, operand 1']
    #allocation9 [shape = 's32[2]{0}', space=sflag, size = 0x8, scoped, tag = 'scoped memory for tpu_custom_call.1']
    %9 = vsyncpa [#allocation3], 0
    %s10 = scalar_lea.sflag [#allocation3], 1
    %11 = vsyncpa %s10, 0
    %12 = vsyncpa [#allocation6], 0
    %s13 = scalar_lea.sflag [#allocation6], 1
    %14 = vsyncpa %s13, 0
    %15 = vsyncpa [#allocation4], 0
    %s16 = scalar_lea.sflag [#allocation4], 1
    %17 = vsyncpa %s16, 0
    %18 = vsyncpa [#allocation9], 0
    %s19 = scalar_lea.sflag [#allocation9], 1
    %20 = vsyncpa %s19, 0
    loop: start=0, step=1, limit=4
    $region2: #{tpu_custom_call.1} parent=1 // loop_pre_header
      _
    $region3: #{tpu_custom_call.1} parent=1 // loop_header
      %s22 = sphi 0, %s26
      %p23 = scmp.ge.s32.totalorder %s22, 4
      %s29 = sphi 0, %s41
      %s30 = sphi 0, %s37
      %s31 = sphi 0, %s29
      %s32 = sphi 0, %s30
      %s33 = sphi 0, %s31
      %s34 = sphi 0, %s32
      %s50 = sphi 0, %s52
      %s53 = sphi 0, %s50
      %s54 = sphi 0, %s53
      %s70 = sphi 0, %s54
      %s82 = sphi 0, %s84
      %s85 = sphi 0, %s82
      %s86 = sphi 0, %s85
      %s102 = sphi 0, %s86
      %s108 = sphi 0, %s110
      %s111 = sphi 0, %s108
      %s112 = sphi 0, %s111
      %s128 = sphi 0, %s112
      %s134 = sphi 0, %s136
      %s137 = sphi 0, %s134
      %s138 = sphi 0, %s137
      %s154 = sphi 0, %s138
    $region4: #{tpu_custom_call.1} parent=1 // loop_header_branch
      %25 = sbr.rel (%p23) target = $region8
    $region5: #{tpu_custom_call.1} parent=1 // loop_body
      %s27 = ssub.s32 %s22, 1
      %s28 = ssub.s32 %s22, 2
      %s35 = sadd.s32 1, %s30
      %p36 = scmp.ge.s32.totalorder %s35, 1
      %s37 = scalar_select %p36, 0, %s35
      %s38 = sadd.s32 1, %s29
      %s39 = scalar_select %p36, %s38, %s29
      %p40 = scmp.ge.s32.totalorder %s39, 2
      %s41 = scalar_select %p40, 0, %s39
      %s42 = sadd.s32 %s29, %s30
      %p43 = scmp.lt.s32.totalorder %s42, 0
      %s44 = scalar_select %p43, %s42, 0
      %s45 = sadd.s32 %s41, %s37
      %p46 = scmp.lt.s32.totalorder %s45, 0
      %s47 = scalar_select %p46, %s45, 0
      %s48 = ssub.s32 %s44, %s47
      %p49 = scmp.eq.s32.totalorder %s48, 0
      %s51 = sadd.s32 %s50, 1
      %s52 = scalar_select %p49, %s50, %s51
      %p55 = pneg %p49
      %p56 = scmp.eq.s32.totalorder %s22, 1
      %p57 = por %p55, %p56
      %p58 = scmp.ne.s32.totalorder %s50, %s53
      %p59 = scmp.eq.s32.totalorder %s22, 0
      %p60 = por %p58, %p59
      %p61 = scmp.ne.s32.totalorder %s50, %s53
      %p62 = scmp.eq.s32.totalorder %s27, 1
      %p63 = por %p61, %p62
      %p64 = scmp.ne.s32.totalorder %s53, %s54
      %p65 = scmp.eq.s32.totalorder %s27, 0
      %p66 = por %p64, %p65
      %p67 = scmp.ne.s32.totalorder %s53, %s54
      %p68 = scmp.eq.s32.totalorder %s28, 1
      %p69 = por %p67, %p68
      %p71 = scmp.ne.s32.totalorder %s54, %s70
      %p72 = scmp.eq.s32.totalorder %s28, 0
      %p73 = por %p71, %p72
      %s74 = sadd.s32 %s29, %s30
      %p75 = scmp.lt.s32.totalorder %s74, 0
      %s76 = scalar_select %p75, %s74, 0
      %s77 = sadd.s32 %s41, %s37
      %p78 = scmp.lt.s32.totalorder %s77, 0
      %s79 = scalar_select %p78, %s77, 0
      %s80 = ssub.s32 %s76, %s79
      %p81 = scmp.eq.s32.totalorder %s80, 0
      %s83 = sadd.s32 %s82, 1
      %s84 = scalar_select %p81, %s82, %s83
      %p87 = pneg %p81
      %p88 = scmp.eq.s32.totalorder %s22, 1
      %p89 = por %p87, %p88
      %p90 = scmp.ne.s32.totalorder %s82, %s85
      %p91 = scmp.eq.s32.totalorder %s22, 0
      %p92 = por %p90, %p91
      %p93 = scmp.ne.s32.totalorder %s82, %s85
      %p94 = scmp.eq.s32.totalorder %s27, 1
      %p95 = por %p93, %p94
      %p96 = scmp.ne.s32.totalorder %s85, %s86
      %p97 = scmp.eq.s32.totalorder %s27, 0
      %p98 = por %p96, %p97
      %p99 = scmp.ne.s32.totalorder %s85, %s86
      %p100 = scmp.eq.s32.totalorder %s28, 1
      %p101 = por %p99, %p100
      %p103 = scmp.ne.s32.totalorder %s86, %s102
      %p104 = scmp.eq.s32.totalorder %s28, 0
      %p105 = por %p103, %p104
      %s106 = ssub.s32 %s29, %s41
      %p107 = scmp.eq.s32.totalorder %s106, 0
      %s109 = sadd.s32 %s108, 1
      %s110 = scalar_select %p107, %s108, %s109
      %p113 = pneg %p107
      %p114 = scmp.eq.s32.totalorder %s22, 1
      %p115 = por %p113, %p114
      %p116 = scmp.ne.s32.totalorder %s108, %s111
      %p117 = scmp.eq.s32.totalorder %s22, 0
      %p118 = por %p116, %p117
      %p119 = scmp.ne.s32.totalorder %s108, %s111
      %p120 = scmp.eq.s32.totalorder %s27, 1
      %p121 = por %p119, %p120
      %p122 = scmp.ne.s32.totalorder %s111, %s112
      %p123 = scmp.eq.s32.totalorder %s27, 0
      %p124 = por %p122, %p123
      %p125 = scmp.ne.s32.totalorder %s111, %s112
      %p126 = scmp.eq.s32.totalorder %s28, 1
      %p127 = por %p125, %p126
      %p129 = scmp.ne.s32.totalorder %s112, %s128
      %p130 = scmp.eq.s32.totalorder %s28, 0
      %p131 = por %p129, %p130
      %s132 = ssub.s32 %s29, %s41
      %p133 = scmp.eq.s32.totalorder %s132, 0
      %s135 = sadd.s32 %s134, 1
      %s136 = scalar_select %p133, %s134, %s135
      %p139 = pneg %p133
      %p140 = scmp.eq.s32.totalorder %s22, 1
      %p141 = por %p139, %p140
      %p142 = scmp.ne.s32.totalorder %s134, %s137
      %p143 = scmp.eq.s32.totalorder %s22, 0
      %p144 = por %p142, %p143
      %p145 = scmp.ne.s32.totalorder %s134, %s137
      %p146 = scmp.eq.s32.totalorder %s27, 1
      %p147 = por %p145, %p146
      %p148 = scmp.ne.s32.totalorder %s137, %s138
      %p149 = scmp.eq.s32.totalorder %s27, 0
      %p150 = por %p148, %p149
      %p151 = scmp.ne.s32.totalorder %s137, %s138
      %p152 = scmp.eq.s32.totalorder %s28, 1
      %p153 = por %p151, %p152
      %p155 = scmp.ne.s32.totalorder %s138, %s154
      %p156 = scmp.eq.s32.totalorder %s28, 0
      %p157 = por %p155, %p156
      %p158 = scmp.le.s32.totalorder 1, %s22
      %p159 = scmp.lt.s32.totalorder %s22, 3
      %p160 = pnand %p158, %p159
      %p161 = pneg %p160
      // Predicated region
      $region9: #{tpu_custom_call.1} parent=5 // pred_check
        _
      $region10: #{tpu_custom_call.1} parent=5 // pred_check_branch
        %163 = sbr.rel (%p160) target = $region12
      $region11: #{tpu_custom_call.1} parent=5 // pred_region
        %s164 = ssub.s32 %s22, 1
      $region12: #{tpu_custom_call.1} parent=5 // pred_fallthru
        _
      %p165 = scmp.lt.s32.totalorder %s22, 2
      // Predicated region
      $region13: #{tpu_custom_call.1} parent=5 // pred_check
        %p166 = pneg %p165
      $region14: #{tpu_custom_call.1} parent=5 // pred_check_branch
        %168 = sbr.rel (%p166) target = $region16
      $region15: #{tpu_custom_call.1} parent=5 // pred_region
        // Predicated region
        $region17: #{tpu_custom_call.1} parent=15 // pred_check
          %p169 = pneg %p60
        $region18: #{tpu_custom_call.1} parent=15 // pred_check_branch
          %171 = sbr.rel (%p169) target = $region20
        $region19: #{tpu_custom_call.1} parent=15 // pred_region
          %s172 = sand.u32 %s50, 1
          %s173 = scalar_lea.sflag [#allocation3], %s172
          %s174 = sand.u32 %s50, 1
          %s175 = smul.addr %s174, 16
          %s176 = scalar_lea.vmem [#allocation2], %s175
          %s177 = sadd.s32 %s29, %s30
          %p178 = scmp.lt.s32.totalorder %s177, 0
          %s179 = scalar_select %p178, %s177, 0
          %s180 = smul.u32 2, %s179
          %182 = vsyncadd %s173, 0
          %s183 = smul.addr %s180, 8
          %s184 = scalar_lea.hbm %s0, %s183
          %s185 = sshll.u32 %s184, 4
          %s186 = int_to_ptr.hbm [resolvable:$true] %s185
          %s187 = sshll.u32 %s176, 4
          %s188 = int_to_ptr.vmem [resolvable:$true] %s187
          %193 = dma.hbm_to_vmem [thread:$0]  %s186, 256, %s188, %s173, 128, 128, 8
        $region20: #{tpu_custom_call.1} parent=15 // pred_fallthru
          _
        // Predicated region
        $region21: #{tpu_custom_call.1} parent=15 // pred_check
          %p194 = pneg %p92
        $region22: #{tpu_custom_call.1} parent=15 // pred_check_branch
          %196 = sbr.rel (%p194) target = $region24
        $region23: #{tpu_custom_call.1} parent=15 // pred_region
          %s197 = sand.u32 %s82, 1
          %s198 = scalar_lea.sflag [#allocation6], %s197
          %s199 = sand.u32 %s82, 1
          %s200 = smul.addr %s199, 16
          %s201 = scalar_lea.vmem [#allocation5], %s200
          %s202 = sadd.s32 %s29, %s30
          %p203 = scmp.lt.s32.totalorder %s202, 0
          %s204 = scalar_select %p203, %s202, 0
          %s205 = smul.u32 2, %s204
          %207 = vsyncadd %s198, 0
          %s208 = smul.addr %s205, 8
          %s209 = scalar_lea.hbm %s1, %s208
          %s210 = sshll.u32 %s209, 4
          %s211 = int_to_ptr.hbm [resolvable:$true] %s210
          %s212 = sshll.u32 %s201, 4
          %s213 = int_to_ptr.vmem [resolvable:$true] %s212
          %218 = dma.hbm_to_vmem [thread:$0]  %s211, 256, %s213, %s198, 128, 128, 8
        $region24: #{tpu_custom_call.1} parent=15 // pred_fallthru
          _
      $region16: #{tpu_custom_call.1} parent=5 // pred_fallthru
        _
      %p219 = scmp.le.s32.totalorder 1, %s22
      %p220 = scmp.lt.s32.totalorder %s22, 3
      %p221 = pnand %p219, %p220
      %p222 = pneg %p221
      // Predicated region
      $region25: #{tpu_custom_call.1} parent=5 // pred_check
        _
      $region26: #{tpu_custom_call.1} parent=5 // pred_check_branch
        %224 = sbr.rel (%p221) target = $region28
      $region27: #{tpu_custom_call.1} parent=5 // pred_region
        %s225 = ssub.s32 %s22, 1
        %s226 = sand.u32 %s53, 1
        %s227 = scalar_lea.sflag [#allocation3], %s226
        %s228 = sand.u32 %s53, 1
        %s229 = smul.addr %s228, 16
        %s230 = scalar_lea.vmem [#allocation2], %s229
        // Predicated region
        $region29: #{tpu_custom_call.1} parent=27 // pred_check
          %p231 = pneg %p66
        $region30: #{tpu_custom_call.1} parent=27 // pred_check_branch
          %233 = sbr.rel (%p231) target = $region32
        $region31: #{tpu_custom_call.1} parent=27 // pred_region
          %235 = dma.done %s227, 256
        $region32: #{tpu_custom_call.1} parent=27 // pred_fallthru
          _
        %s236 = sand.u32 %s85, 1
        %s237 = scalar_lea.sflag [#allocation6], %s236
        %s238 = sand.u32 %s85, 1
        %s239 = smul.addr %s238, 16
        %s240 = scalar_lea.vmem [#allocation5], %s239
        // Predicated region
        $region33: #{tpu_custom_call.1} parent=27 // pred_check
          %p241 = pneg %p98
        $region34: #{tpu_custom_call.1} parent=27 // pred_check_branch
          %243 = sbr.rel (%p241) target = $region36
        $region35: #{tpu_custom_call.1} parent=27 // pred_region
          %245 = dma.done %s237, 256
        $region36: #{tpu_custom_call.1} parent=27 // pred_fallthru
          _
        %s246 = sand.u32 %s53, 1
        %s247 = scalar_lea.sflag [#allocation3], %s246
        %s248 = sand.u32 %s53, 1
        %s249 = smul.addr %s248, 16
        %s250 = scalar_lea.vmem [#allocation2], %s249
        %p251 = pneg %p66
        %p252 = pneg %p63
        %s253 = sand.u32 %s85, 1
        %s254 = scalar_lea.sflag [#allocation6], %s253
        %s255 = sand.u32 %s85, 1
        %s256 = smul.addr %s255, 16
        %s257 = scalar_lea.vmem [#allocation5], %s256
        %p258 = pneg %p98
        %p259 = pneg %p95
        %p260 = pneg %p124
        %p261 = pneg %p121
        %s262 = sand.u32 %s111, 1
        %s263 = scalar_lea.sflag [#allocation4], %s262
        %s264 = sand.u32 %s111, 1
        %s265 = smul.addr %s264, 8
        %s266 = scalar_lea.vmem [#allocation7], %s265
        %p267 = pneg %p150
        %p268 = pneg %p147
        %s269 = sand.u32 %s137, 1
        %s270 = scalar_lea.sflag [#allocation9], %s269
        %s271 = sand.u32 %s137, 1
        %s272 = smul.addr %s271, 8
        %s273 = scalar_lea.vmem [#allocation8], %s272
        %s274 = sadd.s32 %s31, %s32
        %p275 = scmp.lt.s32.totalorder %s274, 0
        %s276 = scalar_select %p275, %s274, 0
        %s277 = smul.u32 2, %s276
        %s278 = sadd.s32 %s31, %s32
        %p279 = scmp.lt.s32.totalorder %s278, 0
        %s280 = scalar_select %p279, %s278, 0
        %s281 = smul.u32 2, %s280
        %p282 = scmp.eq.s32.totalorder %s32, 0
        // Predicated region
        $region37: #{tpu_custom_call.1} parent=27 // pred_check
          %p283 = pneg %p282
        $region38: #{tpu_custom_call.1} parent=27 // pred_check_branch
          %285 = sbr.rel (%p283) target = $region40
        $region39: #{tpu_custom_call.1} parent=27 // pred_region
          %286 = vst [vmem:[%s266] sm:$0xff] 0.0
          %287 = vst [vmem:[%s273] sm:$0xff] 0.0
        $region40: #{tpu_custom_call.1} parent=27 // pred_fallthru
          _
        %s288 = sadd.s32 %s31, %s32
        %s289 = smul.u32 %s288, 16
        %v290 = vld [vmem:[%s230] sm:$0xff]
        %v291 = vld [vmem:[%s230 + $0x8] sm:$0xff]
        %v292 = vld [vmem:[%s240] sm:$0xff]
        %v293 = vld [vmem:[%s240 + $0x8] sm:$0xff]
        %v294 = vmul.f32 %v290, 0.5
        %v295 = vmul.f32 %v291, 0.5
        %v296 = vtanh.pop %v294
        %v297 = vtanh.pop %v295
        %v298 = vadd.f32 %v296, 1.0
        %v299 = vadd.f32 %v297, 1.0
        %v300 = vmul.f32 %v298, 0.5
        %v301 = vmul.f32 %v299, 0.5
        %s302 = ssub.s32 16, %s289
        %v303 = vlaneseq
        %v304 = vshrl.u32 %v303, 7
        %v305 = vadd.s32 %v304, 8
        %v306 = vstv %s302
        %vm307 = vcmp.lt.s32.totalorder %v304, %v306
        %vm308 = vcmp.lt.s32.totalorder %v305, %v306
        %v309 = vsel %vm307, %v300, 0.0
        %v310 = vsel %vm308, %v301, 0.0
        %v311 = vsel %vm307, %v292, 0.0
        %v312 = vsel %vm308, %v293, 0.0
        %v313 = vld [vmem:[%s266] sm:$0xff]
        %v314 = vmul.f32 %v309, %v311
        %v315 = vmul.f32 %v310, %v312
        %v316 = vadd.f32 %v314, %v315
        %v317 = vadd.f32 %v313, %v316
        %318 = vst [vmem:[%s266] sm:$0xff] %v317
        %v319 = vld [vmem:[%s273] sm:$0xff]
        %v320 = vadd.f32 %v309, %v311
        %v321 = vadd.f32 %v310, %v312
        %v322 = vadd.f32 %v320, %v321
        %v323 = vadd.f32 %v319, %v322
        %324 = vst [vmem:[%s273] sm:$0xff] %v323
        %s325 = sand.u32 %s111, 1
        %s326 = scalar_lea.sflag [#allocation4], %s325
        %s327 = sand.u32 %s111, 1
        %s328 = smul.addr %s327, 8
        %s329 = scalar_lea.vmem [#allocation7], %s328
        %s330 = sand.u32 %s137, 1
        %s331 = scalar_lea.sflag [#allocation9], %s330
        %s332 = sand.u32 %s137, 1
        %s333 = smul.addr %s332, 8
        %s334 = scalar_lea.vmem [#allocation8], %s333
        // Predicated region
        $region41: #{tpu_custom_call.1} parent=27 // pred_check
          %p335 = pneg %p121
        $region42: #{tpu_custom_call.1} parent=27 // pred_check_branch
          %337 = sbr.rel (%p335) target = $region44
        $region43: #{tpu_custom_call.1} parent=27 // pred_region
          %339 = vsyncadd %s326, 0
          %s340 = smul.addr %s31, 8
          %s341 = scalar_lea.hbm %s2, %s340
          %s343 = sshll.u32 %s329, 4
          %s344 = int_to_ptr.vmem [resolvable:$true] %s343
          %s345 = sshll.u32 %s341, 4
          %s346 = int_to_ptr.hbm [resolvable:$true] %s345
          %348 = dma.vmem_to_hbm [thread:$0]  %s344, 128, %s346, %s326
        $region44: #{tpu_custom_call.1} parent=27 // pred_fallthru
          _
        // Predicated region
        $region45: #{tpu_custom_call.1} parent=27 // pred_check
          %p349 = pneg %p147
        $region46: #{tpu_custom_call.1} parent=27 // pred_check_branch
          %351 = sbr.rel (%p349) target = $region48
        $region47: #{tpu_custom_call.1} parent=27 // pred_region
          %353 = vsyncadd %s331, 0
          %s354 = smul.addr %s31, 8
          %s355 = scalar_lea.hbm %s3, %s354
          %s357 = sshll.u32 %s334, 4
          %s358 = int_to_ptr.vmem [resolvable:$true] %s357
          %s359 = sshll.u32 %s355, 4
          %s360 = int_to_ptr.hbm [resolvable:$true] %s359
          %362 = dma.vmem_to_hbm [thread:$0]  %s358, 128, %s360, %s331
        $region48: #{tpu_custom_call.1} parent=27 // pred_fallthru
          _
      $region28: #{tpu_custom_call.1} parent=5 // pred_fallthru
        _
      %p363 = scmp.le.s32.totalorder 2, %s22
      // Predicated region
      $region49: #{tpu_custom_call.1} parent=5 // pred_check
        %p364 = pneg %p363
      $region50: #{tpu_custom_call.1} parent=5 // pred_check_branch
        %366 = sbr.rel (%p364) target = $region52
      $region51: #{tpu_custom_call.1} parent=5 // pred_region
        %s367 = ssub.s32 %s22, 2
        // Predicated region
        $region53: #{tpu_custom_call.1} parent=51 // pred_check
          %p368 = pneg %p127
        $region54: #{tpu_custom_call.1} parent=51 // pred_check_branch
          %370 = sbr.rel (%p368) target = $region56
        $region55: #{tpu_custom_call.1} parent=51 // pred_region
          %s371 = sand.u32 %s112, 1
          %s372 = scalar_lea.sflag [#allocation4], %s371
          %s373 = sand.u32 %s112, 1
          %s374 = smul.addr %s373, 8
          %s375 = scalar_lea.vmem [#allocation7], %s374
          %377 = dma.done %s372, 128
        $region56: #{tpu_custom_call.1} parent=51 // pred_fallthru
          _
        // Predicated region
        $region57: #{tpu_custom_call.1} parent=51 // pred_check
          %p378 = pneg %p153
        $region58: #{tpu_custom_call.1} parent=51 // pred_check_branch
          %380 = sbr.rel (%p378) target = $region60
        $region59: #{tpu_custom_call.1} parent=51 // pred_region
          %s381 = sand.u32 %s138, 1
          %s382 = scalar_lea.sflag [#allocation9], %s381
          %s383 = sand.u32 %s138, 1
          %s384 = smul.addr %s383, 8
          %s385 = scalar_lea.vmem [#allocation8], %s384
          %387 = dma.done %s382, 128
        $region60: #{tpu_custom_call.1} parent=51 // pred_fallthru
          _
      $region52: #{tpu_custom_call.1} parent=5 // pred_fallthru
        _
    $region6: #{tpu_custom_call.1} parent=1 // loop_footer
      %s26 = sadd.s32 1, %s22
    $region7: #{tpu_custom_call.1} parent=1 // loop_footer_branch
      %21 = sbr.rel target = $region3
    $region8: #{tpu_custom_call.1} parent=1 // loop_exit
      _
    %388 = vsyncpa [#allocation3], 1
    %s389 = scalar_lea.sflag [#allocation3], 1
    %390 = vsyncpa %s389, 1
    %391 = vsyncpa [#allocation6], 1
    %s392 = scalar_lea.sflag [#allocation6], 1
    %393 = vsyncpa %s392, 1
    %394 = vsyncpa [#allocation4], 1
    %s395 = scalar_lea.sflag [#allocation4], 1
    %396 = vsyncpa %s395, 1
    %397 = vsyncpa [#allocation9], 1
    %s398 = scalar_lea.sflag [#allocation9], 1
    %399 = vsyncpa %s398, 1

</llo_original>
